<compile_context>
chip_gen: v7x
topology: tpu7x:2x2x1
jax: 0.10.0
libtpu: 0.0.40
codegen_flags: <defaults>
</compile_context>

<pallas_src>
import functools

import numpy as np

import jax
import jax.numpy as jnp
from jax import lax
from jax.experimental import pallas as pl
from jax.experimental.pallas import tpu as pltpu

LANE = 128


def _round_up(x, m):
    return ((x + m - 1) // m) * m


def _pad2(x, rows, cols):
    return jnp.pad(x, ((0, rows - x.shape[0]), (0, cols - x.shape[1])))


def _nbytes(shape, dtype):
    n = 1
    for d in shape:
        n *= int(d)
    return n * np.dtype(dtype).itemsize


def _default_cfg():
    """Per-generation tile / VMEM budgets (conservative fallback is v7x-safe)."""
    vmem_bytes = 64 * 1024 * 1024
    try:
        vmem_bytes = int(pltpu.get_tpu_info().vmem_capacity_bytes)
    except Exception:
        pass
    if vmem_bytes >= 100 * 1024 * 1024:
        # v5e / v6e: 128 MiB VMEM -> large streaming tiles, ~96 MiB scoped limit.
        return dict(tm_target=1024, tk_target=4096,
                    vmem_limit=96 * 1024 * 1024, p_budget=16 * 1024 * 1024)
    # v7x (64 MiB / TC) or unknown: keep the working set well under 64 MiB.
    return dict(tm_target=512, tk_target=2048,
                vmem_limit=48 * 1024 * 1024, p_budget=8 * 1024 * 1024)


def _choose_tiles(n, tm_target, tk_target):
    """Row / column tiles for the NxN adjacency.

    Prefers large streaming (tk) tiles and pads N up to a tile multiple (a few
    extra zero rows/cols of int8 A are cheap) instead of collapsing to 128-wide
    tiles where streaming efficiency is poor.
    """
    n128 = _round_up(max(int(n), 1), LANE)
    tk = min(tk_target, n128)
    while tk > 512 and (_round_up(n128, tk) - n128) * 4 > n128:  # <=25% padding
        tk = _round_up(tk // 2, LANE)
    n_pad = _round_up(n128, tk)
    tm = min(tm_target, n_pad)
    while n_pad % tm:
        tm = _round_up(tm // 2, LANE)
    return tm, tk, n_pad


# --------------------------------------------------------------------------
# Kernel 1: fused input projection  [P | R] = X @ [W_l | W_r]  (+ bias on R).
#   Only needed for the raw input features; later layers fuse this into the
#   previous aggregation's epilogue.
# --------------------------------------------------------------------------
def _project_kernel(x_ref, w_ref, b_ref, p_ref, r_ref, *, f_out_pad):
    xw = jnp.dot(x_ref[...], w_ref[...], preferred_element_type=jnp.float32)
    p_ref[...] = xw[:, :f_out_pad].astype(p_ref.dtype)
    r_ref[...] = (xw[:, f_out_pad:] + b_ref[...]).astype(r_ref.dtype)


def project(x, w_cat, b, *, f_out_pad, tm, vmem_limit):
    n, f_in_pad = x.shape
    kernel = functools.partial(_project_kernel, f_out_pad=f_out_pad)
    flops = 2 * n * f_in_pad * 2 * f_out_pad
    bytes_accessed = (_nbytes((n, f_in_pad), jnp.bfloat16)
                      + _nbytes((f_in_pad, 2 * f_out_pad), jnp.bfloat16)
                      + _nbytes((1, f_out_pad), jnp.float32)
                      + 2 * _nbytes((n, f_out_pad), jnp.bfloat16))
    return pl.pallas_call(
        kernel,
        out_shape=(jax.ShapeDtypeStruct((n, f_out_pad), jnp.bfloat16),
                   jax.ShapeDtypeStruct((n, f_out_pad), jnp.bfloat16)),
        grid=(n // tm,),
        in_specs=[
            pl.BlockSpec((tm, f_in_pad), lambda i: (i, 0)),             # X rows
            pl.BlockSpec((f_in_pad, 2 * f_out_pad), lambda i: (0, 0)),  # [W_l|W_r]
            pl.BlockSpec((1, f_out_pad), lambda i: (0, 0)),             # bias
        ],
        out_specs=(pl.BlockSpec((tm, f_out_pad), lambda i: (i, 0)),
                   pl.BlockSpec((tm, f_out_pad), lambda i: (i, 0))),
        compiler_params=pltpu.CompilerParams(
            dimension_semantics=("parallel",), vmem_limit_bytes=vmem_limit),
        cost_estimate=pl.CostEstimate(flops=flops, transcendentals=0,
                                      bytes_accessed=bytes_accessed),
    )(x, w_cat, b)


# --------------------------------------------------------------------------
# Kernel 2: tiled aggregation + fused epilogue.
#   acc  = A @ P       (A streamed as int8, upcast to bf16; f32 accumulator)
#   deg  = rowsum(A)   (first layer only; emits inv_deg for reuse)
#   h    = acc * inv_deg + R   (+ optional L2-normalize / relu)
#   then either: fused next-layer projection  [P'|R'] = h @ [W_l'|W_r'] (+b')
#          or  : masked softmax over the real feature lanes (exact divide).
# Grid: (row tiles [parallel], K tiles over A's columns [arbitrary, last]).
# --------------------------------------------------------------------------
def _sage_agg_kernel(*refs, compute_deg, fuse_next, normalize, relu,
                     apply_softmax, f_out, fo_next_pad, p_resident, tk):
    it = iter(refs)
    a_ref = next(it)                                   # (tm, tk) int8 A tile
    p_ref = next(it)                                   # P (resident or k-tile)
    r_ref = next(it)                                   # (tm, Fp) bf16 root term
    idg_in = None if compute_deg else next(it)         # (tm, 1) f32 inv_deg
    w_next = next(it) if fuse_next else None           # (Fp, 2*Fnp) bf16
    b_next = next(it) if fuse_next else None           # (1, Fnp) f32
    if fuse_next:
        p_out, r_out, o_ref = next(it), next(it), None
    else:
        p_out, r_out, o_ref = None, None, next(it)
    idg_out = next(it) if compute_deg else None        # (tm, 1) f32
    acc_ref = next(it)                                 # (tm, Fp) f32 scratch
    deg_ref = next(it) if compute_deg else None        # (tm, 1) f32 scratch

    k = pl.program_id(1)
    nk = pl.num_programs(1)

    @pl.when(k == 0)
    def _():
        acc_ref[...] = jnp.zeros_like(acc_ref)
        if compute_deg:
            deg_ref[...] = jnp.zeros_like(deg_ref)

    # int8 0/1 adjacency tile -> bf16 for the MXU (exact), f32 for the rowsum.
    a_tile = a_ref[...]
    if p_resident:
        start = pl.multiple_of(k * tk, LANE)
        p_blk = p_ref[pl.ds(start, tk), :]
    else:
        p_blk = p_ref[...]
    acc_ref[...] += jnp.dot(a_tile.astype(jnp.bfloat16), p_blk,
                            preferred_element_type=jnp.float32)
    if compute_deg:
        deg_ref[...] += jnp.sum(a_tile.astype(jnp.float32), axis=-1,
                                keepdims=True)

    @pl.when(k == nk - 1)
    def _():
        if compute_deg:
            idg = 1.0 / jnp.maximum(deg_ref[...], 1.0)   # once per row tile
            idg_out[...] = idg
        else:
            idg = idg_in[...]
        out = acc_ref[...] * idg + r_ref[...].astype(jnp.float32)
        if normalize:
            # F.normalize(out, p=2, dim=-1), eps=1e-12 (padded lanes are zero)
            ss = jnp.sum(out * out, axis=-1, keepdims=True)
            out = out * lax.rsqrt(jnp.maximum(ss, 1e-24))
        if relu:
            out = jnp.maximum(out, 0.0)
        if apply_softmax:
            lane = lax.broadcasted_iota(jnp.int32, out.shape, 1)
            valid = lane < f_out
            m = jnp.max(jnp.where(valid, out, -1e30), axis=-1, keepdims=True)
            e = jnp.where(valid, jnp.exp(out - m), 0.0)
            # exact divide (runs once per row tile) -> rows sum to 1 in f32
            out = e / jnp.sum(e, axis=-1, keepdims=True)
        if fuse_next:
            # fused next-layer projection: [P' | R'] = h @ [W_l' | W_r'] (+ b')
            xw = jnp.dot(out.astype(jnp.bfloat16), w_next[...],
                         preferred_element_type=jnp.float32)
            p_out[...] = xw[:, :fo_next_pad].astype(p_out.dtype)
            r_out[...] = (xw[:, fo_next_pad:] + b_next[...]).astype(r_out.dtype)
        else:
            o_ref[...] = out.astype(o_ref.dtype)


def sage_aggregate(a, p, r, *, w_next=None, b_next=None, idg=None,
                   tm, tk, fo_next_pad=0, normalize=False, relu=False,
                   softmax=False, f_out=0, out_dtype=jnp.float32,
                   p_resident=False, vmem_limit):
    n_pad = a.shape[0]
    fo_pad = p.shape[1]
    compute_deg = idg is None
    fuse_next = w_next is not None
    grid = (n_pad // tm, n_pad // tk)

    inputs = [a, p, r]
    in_specs = [
        pl.BlockSpec((tm, tk), lambda i, k: (i, k)),                 # A int8 tile
        (pl.BlockSpec((n_pad, fo_pad), lambda i, k: (0, 0)) if p_resident
         else pl.BlockSpec((tk, fo_pad), lambda i, k: (k, 0))),      # P
        pl.BlockSpec((tm, fo_pad), lambda i, k: (i, 0)),             # R
    ]
    if not compute_deg:
        inputs.append(idg)
        in_specs.append(pl.BlockSpec((tm, 1), lambda i, k: (i, 0)))
    if fuse_next:
        fin_next = w_next.shape[0]
        inputs += [w_next, b_next]
        in_specs += [pl.BlockSpec((fin_next, 2 * fo_next_pad), lambda i, k: (0, 0)),
                     pl.BlockSpec((1, fo_next_pad), lambda i, k: (0, 0))]

    out_shapes, out_specs = [], []
    if fuse_next:
        out_shapes += [jax.ShapeDtypeStruct((n_pad, fo_next_pad), jnp.bfloat16),
                       jax.ShapeDtypeStruct((n_pad, fo_next_pad), jnp.bfloat16)]
        out_specs += [pl.BlockSpec((tm, fo_next_pad), lambda i, k: (i, 0)),
                      pl.BlockSpec((tm, fo_next_pad), lambda i, k: (i, 0))]
    else:
        out_shapes.append(jax.ShapeDtypeStruct((n_pad, fo_pad), out_dtype))
        out_specs.append(pl.BlockSpec((tm, fo_pad), lambda i, k: (i, 0)))
    if compute_deg:
        out_shapes.append(jax.ShapeDtypeStruct((n_pad, 1), jnp.float32))
        out_specs.append(pl.BlockSpec((tm, 1), lambda i, k: (i, 0)))

    scratch = [pltpu.VMEM((tm, fo_pad), jnp.float32)]
    if compute_deg:
        scratch.append(pltpu.VMEM((tm, 1), jnp.float32))

    kernel = functools.partial(
        _sage_agg_kernel, compute_deg=compute_deg, fuse_next=fuse_next,
        normalize=normalize, relu=relu, apply_softmax=softmax, f_out=f_out,
        fo_next_pad=fo_next_pad, p_resident=p_resident, tk=tk)

    # Advisory cost model: traffic is dominated by the int8 adjacency stream.
    flops = 2 * n_pad * n_pad * fo_pad
    if fuse_next:
        flops += 2 * n_pad * fo_pad * (2 * fo_next_pad)
    p_refetch = 1 if p_resident else (n_pad // tm)
    bytes_accessed = (n_pad * n_pad                                  # A (int8)
                      + p_refetch * _nbytes(p.shape, p.dtype)
                      + _nbytes(r.shape, r.dtype)
                      + sum(_nbytes(s.shape, s.dtype) for s in out_shapes))
    transcendentals = n_pad * (fo_pad if softmax else 1)

    return pl.pallas_call(
        kernel,
        out_shape=tuple(out_shapes),
        grid=grid,
        in_specs=in_specs,
        out_specs=tuple(out_specs),
        scratch_shapes=scratch,
        compiler_params=pltpu.CompilerParams(
            dimension_semantics=("parallel", "arbitrary"),
            vmem_limit_bytes=vmem_limit),
        cost_estimate=pl.CostEstimate(flops=flops,
                                      transcendentals=transcendentals,
                                      bytes_accessed=bytes_accessed),
    )(*inputs)


# --------------------------------------------------------------------------
# Parameters & forward pass
# --------------------------------------------------------------------------
def init_params(key, input_dim, hidden_dim, output_dim, num_layers):
    """Deterministic glorot-uniform init matching SAGEConv parameter shapes."""
    dims = [(input_dim, hidden_dim)]
    dims += [(hidden_dim, hidden_dim)] * (num_layers - 1)
    dims += [(hidden_dim, output_dim)]
    params = []
    for fi, fo in dims:
        key, k1, k2 = jax.random.split(key, 3)
        limit = jnp.sqrt(6.0 / (fi + fo))
        w_l = jax.random.uniform(k1, (fi, fo), jnp.float32, -limit, limit)
        w_r = jax.random.uniform(k2, (fi, fo), jnp.float32, -limit, limit)
        b = jnp.zeros((fo,), jnp.float32)
        params.append((w_l, w_r, b))
    return params


def graphsage_forward(x, adj, params, num_layers, *, cfg=None):
    """Forward pass of GraphSAGEWithSampling.forward (return_embeds=False)."""
    cfg = cfg or _default_cfg()
    n = x.shape[0]
    tm, tk, n_pad = _choose_tiles(n, cfg["tm_target"], cfg["tk_target"])

    # Adjacency stored in HBM as int8 (values 0/1 -> exact), padded once.
    a = _pad2(adj, n_pad, n_pad).astype(jnp.int8)

    # Pack per-layer weights: one fused [Fin_pad, 2*Fout_pad] bf16 block per
    # layer; zero-padded columns / bias keep padded lanes exactly zero.
    packed = []
    for w_l, w_r, b in params:
        fi, fo = w_l.shape
        fi_p, fo_p = _round_up(fi, LANE), _round_up(fo, LANE)
        w_cat = jnp.concatenate(
            [_pad2(w_l, fi_p, fo_p), _pad2(w_r, fi_p, fo_p)], axis=1
        ).astype(jnp.bfloat16)
        b_p = jnp.pad(b, (0, fo_p - fo)).reshape(1, fo_p).astype(jnp.float32)
        packed.append((w_cat, b_p, fi_p, fo_p, fo))

    # Layer-0 projection of the raw features: P0 = X W_l0, R0 = X W_r0 + b0.
    w0, b0, fi0_p, fo0_p, _ = packed[0]
    x_p = _pad2(x, n_pad, fi0_p).astype(jnp.bfloat16)
    p_cur, r_cur = project(x_p, w0, b0, f_out_pad=fo0_p, tm=tm,
                           vmem_limit=cfg["vmem_limit"])

    # Hidden layers: aggregate + normalize + relu, with the NEXT layer's
    # projection fused into the epilogue; the first pass also emits inv_deg.
    idg = None
    for li in range(num_layers):
        fo_p = packed[li][3]
        w_next, b_next, _, fo_next_p, _ = packed[li + 1]
        p_res = n_pad * fo_p * 2 <= cfg["p_budget"]
        outs = sage_aggregate(
            a, p_cur, r_cur, w_next=w_next, b_next=b_next, idg=idg,
            tm=tm, tk=tk, fo_next_pad=fo_next_p, normalize=True, relu=True,
            p_resident=p_res, vmem_limit=cfg["vmem_limit"])
        if idg is None:
            p_cur, r_cur, idg = outs
        else:
            p_cur, r_cur = outs

    # Final conv (no normalize / relu), then softmax over the feature dim.
    _, _, _, fo_p_last, fo_last = packed[-1]
    p_res = n_pad * fo_p_last * 2 <= cfg["p_budget"]
    outs = sage_aggregate(
        a, p_cur, r_cur, idg=idg, tm=tm, tk=tk, softmax=True, f_out=fo_last,
        out_dtype=jnp.float32, p_resident=p_res, vmem_limit=cfg["vmem_limit"])
    out = outs[0]

    # Strip node / feature padding (plain XLA slice outside the kernels).
    return out[:n, :fo_last]


def graphsage_reference(x, adj, params, num_layers):
    """Pure-JAX f32 reference of the same forward pass (verification only)."""
    inv = 1.0 / jnp.maximum(jnp.sum(adj, axis=1, keepdims=True), 1.0)

    def conv(h, w_l, w_r, b, normalize):
        out = ((adj @ h) * inv) @ w_l + b + h @ w_r
        if normalize:
            nrm = jnp.sqrt(jnp.sum(out * out, axis=-1, keepdims=True))
            out = out / jnp.maximum(nrm, 1e-12)
        return out

    h = x
    for i in range(num_layers):
        w_l, w_r, b = params[i]
        h = jax.nn.relu(conv(h, w_l, w_r, b, True))
    w_l, w_r, b = params[-1]
    return jax.nn.softmax(conv(h, w_l, w_r, b, False), axis=1)


if __name__ == "__main__":
    # small deterministic example
    N = 64           # number of nodes
    INPUT_DIM = 16
    HIDDEN_DIM = 32
    OUTPUT_DIM = 8
    NUM_LAYERS = 2   # convs = [in->hid, hid->hid, hid->out]

    key = jax.random.PRNGKey(0)
    kx, ka, kp = jax.random.split(key, 3)

    x = jax.random.normal(kx, (N, INPUT_DIM), jnp.float32)
    # dense random adjacency (~10% edge density); row i = incoming edges to i
    adj = (jax.random.uniform(ka, (N, N)) < 0.1).astype(jnp.float32)

    params = init_params(kp, INPUT_DIM, HIDDEN_DIM, OUTPUT_DIM, NUM_LAYERS)

    out = graphsage_forward(x, adj, params, NUM_LAYERS)
    out = jax.block_until_ready(out)

    assert out.shape == (N, OUTPUT_DIM)
    # softmax rows must sum to 1 (exact divide in the epilogue -> f32 precision)
    assert bool(jnp.allclose(jnp.sum(out, axis=1), 1.0, atol=1e-3))
    # end-to-end check vs a pure-JAX f32 reference (budget for bf16 storage drift)
    ref = graphsage_reference(x, adj, params, NUM_LAYERS)
    assert bool(jnp.allclose(out, ref, atol=5e-2, rtol=0.0))
    print("KERNEL_OK")
</pallas_src>

<mosaic_0001>
module attributes {stable_mosaic.version = 11 : i64} {
  func.func @_project_kernel(%arg0: i32, %arg1: memref<128x128xbf16, #tpu.memory_space<vmem>>, %arg2: memref<128x256xbf16, #tpu.memory_space<vmem>>, %arg3: memref<1x128xf32, #tpu.memory_space<vmem>>, %arg4: memref<128x128xbf16, #tpu.memory_space<vmem>>, %arg5: memref<128x128xbf16, #tpu.memory_space<vmem>>) attributes {dimension_semantics = [#tpu.dimension_semantics<parallel>], iteration_bounds = array<i64: 1>, scalar_prefetch = 0 : i64, scratch_operands = 0 : i64, tpu.core_type = #tpu.core_type<tc>, window_params = [{transform_indices = @transform_0, window_bounds = array<i64: 128, 128>}, {pipeline_mode = #tpu.pipeline_mode<synchronous>, transform_indices = @transform_1, window_bounds = array<i64: 128, 256>}, {pipeline_mode = #tpu.pipeline_mode<synchronous>, transform_indices = @transform_2, window_bounds = array<i64: 1, 128>}, {transform_indices = @transform_3, window_bounds = array<i64: 128, 128>}, {transform_indices = @transform_4, window_bounds = array<i64: 128, 128>}]} {
    %c0 = arith.constant 0 : index
    %c0_0 = arith.constant 0 : index
    %0 = vector.load %arg1[%c0, %c0_0] : memref<128x128xbf16, #tpu.memory_space<vmem>>, vector<128x128xbf16>
    %c0_1 = arith.constant 0 : index
    %c0_2 = arith.constant 0 : index
    %1 = vector.load %arg2[%c0_1, %c0_2] : memref<128x256xbf16, #tpu.memory_space<vmem>>, vector<128x256xbf16>
    %cst = arith.constant dense<0.000000e+00> : vector<128x256xf32>
    %2 = tpu.matmul %0, %1, %cst {dimension_numbers = #tpu.dot_dimension_numbers<[1], [0], [0], [1], [0, 0, 1, 1], [], []>} : vector<128x128xbf16>, vector<128x256xbf16>, vector<128x256xf32> -> vector<128x256xf32>
    %3 = vector.extract_strided_slice %2 {offsets = [0, 0], sizes = [128, 128], strides = [1, 1]} : vector<128x256xf32> to vector<128x128xf32>
    %4 = arith.truncf %3 : vector<128x128xf32> to vector<128x128xbf16>
    %c0_3 = arith.constant 0 : index
    %c0_4 = arith.constant 0 : index
    %5 = vector.load %arg4[%c0_3, %c0_4] : memref<128x128xbf16, #tpu.memory_space<vmem>>, vector<128x128xbf16>
    tpu.vector_store %arg4[%c0_3, %c0_4], %4 {strides = array<i32>} : memref<128x128xbf16, #tpu.memory_space<vmem>>, vector<128x128xbf16>,
    %6 = vector.extract_strided_slice %2 {offsets = [0, 128], sizes = [128, 128], strides = [1, 1]} : vector<128x256xf32> to vector<128x128xf32>
    %c0_5 = arith.constant 0 : index
    %c0_6 = arith.constant 0 : index
    %7 = vector.load %arg3[%c0_5, %c0_6] : memref<1x128xf32, #tpu.memory_space<vmem>>, vector<1x128xf32>
    %8 = vector.broadcast %7 : vector<1x128xf32> to vector<128x128xf32>
    %9 = arith.addf %6, %8 : vector<128x128xf32>
    %10 = arith.truncf %9 : vector<128x128xf32> to vector<128x128xbf16>
    %c0_7 = arith.constant 0 : index
    %c0_8 = arith.constant 0 : index
    %11 = vector.load %arg5[%c0_7, %c0_8] : memref<128x128xbf16, #tpu.memory_space<vmem>>, vector<128x128xbf16>
    tpu.vector_store %arg5[%c0_7, %c0_8], %10 {strides = array<i32>} : memref<128x128xbf16, #tpu.memory_space<vmem>>, vector<128x128xbf16>,
    return
  }
  func.func @transform_0(%arg0: i32) -> (i32, i32) {
    %c0_i32 = arith.constant 0 : i32
    %c0_i32_0 = arith.constant 0 : i32
    return %arg0, %c0_i32 : i32, i32
  }
  func.func @transform_1(%arg0: i32) -> (i32, i32) {
    %c0_i32 = arith.constant 0 : i32
    %c0_i32_0 = arith.constant 0 : i32
    %c0_i32_1 = arith.constant 0 : i32
    return %c0_i32, %c0_i32_0 : i32, i32
  }
  func.func @transform_2(%arg0: i32) -> (i32, i32) {
    %c0_i32 = arith.constant 0 : i32
    %c0_i32_0 = arith.constant 0 : i32
    %c0_i32_1 = arith.constant 0 : i32
    return %c0_i32, %c0_i32_0 : i32, i32
  }
  func.func @transform_3(%arg0: i32) -> (i32, i32) {
    %c0_i32 = arith.constant 0 : i32
    %c0_i32_0 = arith.constant 0 : i32
    return %arg0, %c0_i32 : i32, i32
  }
  func.func @transform_4(%arg0: i32) -> (i32, i32) {
    %c0_i32 = arith.constant 0 : i32
    %c0_i32_0 = arith.constant 0 : i32
    return %arg0, %c0_i32 : i32, i32
  }
}

</mosaic_0001>

<llo_original>
// kernel: tpu_custom_call.1
$region0: #{tpu_custom_call.1}
  #allocation0 [shape = 'u32[]', space=smem, size = 0x4, offset = 0x4, fixed_abs, tag = 'smem constant byte address 0x4 - core index']
  #allocation1 [shape = 'u32[144,128]{1,0:T(1,128)}', space=vmem, size = 0x12000, scoped, tag = 'internal scratch']
  %s0 = inlined_call_operand.hbm [shape: bf16[128,128], index: 0, kind: input, shape index: {}]
  %s1 = inlined_call_operand.hbm [shape: bf16[128,256], index: 1, kind: input, shape index: {}]
  %s2 = inlined_call_operand.vmem [shape: f32[1,128], index: 2, kind: input, shape index: {}]
  %s3 = inlined_call_operand.hbm [shape: bf16[128,128], index: 3, kind: output, shape index: {0}]
  %s4 = inlined_call_operand.hbm [shape: bf16[128,128], index: 4, kind: output, shape index: {1}]
  %5 = xla_tuple %s3, %s4
  %s6 = sld [smem:[#allocation0]]
  $region38: #{tpu_custom_call.1} parent=0
    _
  %s8 = ssub.s32 1, %s6
  %s9 = scalar_select 0, %s8, %s6
  $region1: #{tpu_custom_call.1} parent=0
    #allocation2 [shape = 'u8[32768]{0}', space=vmem, size = 0x8000, scoped, tag = 'input window, operand 0, single buffered']
    #allocation3 [shape = 's32[1]{0}', space=sflag, size = 0x4, scoped, tag = 'scoped memory for tpu_custom_call.1']
    #allocation4 [shape = 's32[1]{0}', space=sflag, size = 0x4, scoped, tag = 'scoped memory for tpu_custom_call.1']
    #allocation5 [shape = 'u8[65536]{0}', space=vmem, size = 0x10000, scoped, tag = 'input window, operand 1, single buffered']
    #allocation6 [shape = 's32[1]{0}', space=sflag, size = 0x4, scoped, tag = 'scoped memory for tpu_custom_call.1']
    #allocation7 [shape = 'u8[32768]{0}', space=vmem, size = 0x8000, scoped, tag = 'output window, operand 0, single buffered']
    #allocation8 [shape = 'u8[32768]{0}', space=vmem, size = 0x8000, scoped, tag = 'output window, operand 1, single buffered']
    #allocation9 [shape = 's32[1]{0}', space=sflag, size = 0x4, scoped, tag = 'scoped memory for tpu_custom_call.1']
    %10 = vsyncpa [#allocation3], 0
    %11 = vsyncpa [#allocation6], 0
    %12 = vsyncpa [#allocation4], 0
    %13 = vsyncpa [#allocation9], 0
    // Predicated region
    $region2: #{tpu_custom_call.1} parent=1 // pred_check
      _
    $region3: #{tpu_custom_call.1} parent=1 // pred_check_branch
      %15 = sbr.rel (0) target = $region5
    $region4: #{tpu_custom_call.1} parent=1 // pred_region
      %s17 = ssub.s32 1024, 1024
      %18 = vsyncadd [#allocation3], %s17
      %s19 = sshll.u32 [#allocation2], 4
      %s20 = int_to_ptr.vmem [resolvable:$true] %s19
      %25 = dma.hbm_to_vmem [thread:$0]  %s0, 1024, %s20, [#allocation3], 64, 64, 4
    $region5: #{tpu_custom_call.1} parent=1 // pred_fallthru
      _
    // Predicated region
    $region6: #{tpu_custom_call.1} parent=1 // pred_check
      _
    $region7: #{tpu_custom_call.1} parent=1 // pred_check_branch
      %27 = sbr.rel (0) target = $region9
    $region8: #{tpu_custom_call.1} parent=1 // pred_region
      %s29 = ssub.s32 2048, 2048
      %30 = vsyncadd [#allocation6], %s29
      %s31 = sshll.u32 [#allocation5], 4
      %s32 = int_to_ptr.vmem [resolvable:$true] %s31
      %37 = dma.hbm_to_vmem [thread:$0]  %s1, 2048, %s32, [#allocation6], 128, 128, 8
    $region9: #{tpu_custom_call.1} parent=1 // pred_fallthru
      _
    // Predicated region
    $region10: #{tpu_custom_call.1} parent=1 // pred_check
      _
    $region11: #{tpu_custom_call.1} parent=1 // pred_check_branch
      %39 = sbr.rel (0) target = $region13
    $region12: #{tpu_custom_call.1} parent=1 // pred_region
      _
    $region13: #{tpu_custom_call.1} parent=1 // pred_fallthru
      _
    // Predicated region
    $region14: #{tpu_custom_call.1} parent=1 // pred_check
      _
    $region15: #{tpu_custom_call.1} parent=1 // pred_check_branch
      %41 = sbr.rel (0) target = $region17
    $region16: #{tpu_custom_call.1} parent=1 // pred_region
      %42 = dma.done [#allocation3], 1024
    $region17: #{tpu_custom_call.1} parent=1 // pred_fallthru
      _
    // Predicated region
    $region18: #{tpu_custom_call.1} parent=1 // pred_check
      _
    $region19: #{tpu_custom_call.1} parent=1 // pred_check_branch
      %44 = sbr.rel (0) target = $region21
    $region20: #{tpu_custom_call.1} parent=1 // pred_region
      %45 = dma.done [#allocation6], 2048
    $region21: #{tpu_custom_call.1} parent=1 // pred_fallthru
      _
    %v47 = vld [vmem:[#allocation2] sm:$0xf]
    %v48 = vld [vmem:[#allocation2 + $0x4] sm:$0xf]
    %v49 = vld [vmem:[#allocation2 + $0x8] sm:$0xf]
    %v50 = vld [vmem:[#allocation2 + $0xc] sm:$0xf]
    %v51 = vld [vmem:[#allocation2 + $0x10] sm:$0xf]
    %v52 = vld [vmem:[#allocation2 + $0x14] sm:$0xf]
    %v53 = vld [vmem:[#allocation2 + $0x18] sm:$0xf]
    %v54 = vld [vmem:[#allocation2 + $0x1c] sm:$0xf]
    %v55 = vld [vmem:[#allocation2 + $0x20] sm:$0xf]
    %v56 = vld [vmem:[#allocation2 + $0x24] sm:$0xf]
    %v57 = vld [vmem:[#allocation2 + $0x28] sm:$0xf]
    %v58 = vld [vmem:[#allocation2 + $0x2c] sm:$0xf]
    %v59 = vld [vmem:[#allocation2 + $0x30] sm:$0xf]
    %v60 = vld [vmem:[#allocation2 + $0x34] sm:$0xf]
    %v61 = vld [vmem:[#allocation2 + $0x38] sm:$0xf]
    %v62 = vld [vmem:[#allocation2 + $0x3c] sm:$0xf]
    %v63 = vld [vmem:[#allocation5] sm:$0xff]
    %v64 = vld [vmem:[#allocation5 + $0x8] sm:$0xff]
    %v65 = vld [vmem:[#allocation5 + $0x10] sm:$0xff]
    %v66 = vld [vmem:[#allocation5 + $0x18] sm:$0xff]
    %v67 = vld [vmem:[#allocation5 + $0x20] sm:$0xff]
    %v68 = vld [vmem:[#allocation5 + $0x28] sm:$0xff]
    %v69 = vld [vmem:[#allocation5 + $0x30] sm:$0xff]
    %v70 = vld [vmem:[#allocation5 + $0x38] sm:$0xff]
    %v71 = vld [vmem:[#allocation5 + $0x40] sm:$0xff]
    %v72 = vld [vmem:[#allocation5 + $0x48] sm:$0xff]
    %v73 = vld [vmem:[#allocation5 + $0x50] sm:$0xff]
    %v74 = vld [vmem:[#allocation5 + $0x58] sm:$0xff]
    %v75 = vld [vmem:[#allocation5 + $0x60] sm:$0xff]
    %v76 = vld [vmem:[#allocation5 + $0x68] sm:$0xff]
    %v77 = vld [vmem:[#allocation5 + $0x70] sm:$0xff]
    %v78 = vld [vmem:[#allocation5 + $0x78] sm:$0xff]
    %v95 = vunpack.c.l.b16 %v47
    %v96 = vunpack.c.l.b16 %v48
    %v97 = vunpack.c.l.b16 %v49
    %v98 = vunpack.c.l.b16 %v50
    %v99 = vunpack.c.l.b16 %v51
    %v100 = vunpack.c.l.b16 %v52
    %v101 = vunpack.c.l.b16 %v53
    %v102 = vunpack.c.l.b16 %v54
    %v103 = vunpack.c.l.b16 %v55
    %v104 = vunpack.c.l.b16 %v56
    %v105 = vunpack.c.l.b16 %v57
    %v106 = vunpack.c.l.b16 %v58
    %v107 = vunpack.c.l.b16 %v59
    %v108 = vunpack.c.l.b16 %v60
    %v109 = vunpack.c.l.b16 %v61
    %v110 = vunpack.c.l.b16 %v62
    %v111 = vpack.c.b16 %v96, %v95
    %v112 = vpack.c.b16 %v98, %v97
    %v113 = vpack.c.b16 %v100, %v99
    %v114 = vpack.c.b16 %v102, %v101
    %v115 = vpack.c.b16 %v104, %v103
    %v116 = vpack.c.b16 %v106, %v105
    %v117 = vpack.c.b16 %v108, %v107
    %v118 = vpack.c.b16 %v110, %v109
    %v143 = vunpack.c.l.b16 %v63
    %v144 = vunpack.c.h.b16 %v63
    %v145 = vunpack.c.l.b16 %v64
    %v146 = vunpack.c.h.b16 %v64
    %v147 = vunpack.c.l.b16 %v65
    %v148 = vunpack.c.h.b16 %v65
    %v149 = vunpack.c.l.b16 %v66
    %v150 = vunpack.c.h.b16 %v66
    %v151 = vunpack.c.l.b16 %v67
    %v152 = vunpack.c.h.b16 %v67
    %v153 = vunpack.c.l.b16 %v68
    %v154 = vunpack.c.h.b16 %v68
    %v155 = vunpack.c.l.b16 %v69
    %v156 = vunpack.c.h.b16 %v69
    %v157 = vunpack.c.l.b16 %v70
    %v158 = vunpack.c.h.b16 %v70
    %v159 = vunpack.c.l.b16 %v71
    %v160 = vunpack.c.h.b16 %v71
    %v161 = vunpack.c.l.b16 %v72
    %v162 = vunpack.c.h.b16 %v72
    %v163 = vunpack.c.l.b16 %v73
    %v164 = vunpack.c.h.b16 %v73
    %v165 = vunpack.c.l.b16 %v74
    %v166 = vunpack.c.h.b16 %v74
    %v167 = vunpack.c.l.b16 %v75
    %v168 = vunpack.c.h.b16 %v75
    %v169 = vunpack.c.l.b16 %v76
    %v170 = vunpack.c.h.b16 %v76
    %v171 = vunpack.c.l.b16 %v77
    %v172 = vunpack.c.h.b16 %v77
    %v173 = vunpack.c.l.b16 %v78
    %v174 = vunpack.c.h.b16 %v78
    %v175 = vpack.c.b16 %v145, %v143
    %v176 = vpack.c.b16 %v146, %v144
    %v177 = vpack.c.b16 %v149, %v147
    %v178 = vpack.c.b16 %v150, %v148
    %v179 = vpack.c.b16 %v153, %v151
    %v180 = vpack.c.b16 %v154, %v152
    %v181 = vpack.c.b16 %v157, %v155
    %v182 = vpack.c.b16 %v158, %v156
    %v183 = vpack.c.b16 %v161, %v159
    %v184 = vpack.c.b16 %v162, %v160
    %v185 = vpack.c.b16 %v165, %v163
    %v186 = vpack.c.b16 %v166, %v164
    %v187 = vpack.c.b16 %v169, %v167
    %v188 = vpack.c.b16 %v170, %v168
    %v189 = vpack.c.b16 %v173, %v171
    %v190 = vpack.c.b16 %v174, %v172
    %207 = vmatprep.subr.bf16.mxu0 %v176
    %208 = vmatpush1.bf16.msra.mxu0 %v175
    %209 = vmatprep.subr.bf16.mxu0 %v178
    %210 = vmatpush1.bf16.msra.mxu0 %v177
    %211 = vmatprep.subr.bf16.mxu0 %v180
    %212 = vmatpush1.bf16.msra.mxu0 %v179
    %213 = vmatprep.subr.bf16.mxu0 %v182
    %214 = vmatpush1.bf16.msra.mxu0 %v181
    %215 = vmatprep.subr.bf16.mxu0 %v184
    %216 = vmatpush1.bf16.msra.mxu0 %v183
    %217 = vmatprep.subr.bf16.mxu0 %v186
    %218 = vmatpush1.bf16.msra.mxu0 %v185
    %219 = vmatprep.subr.bf16.mxu0 %v188
    %220 = vmatpush1.bf16.msra.mxu0 %v187
    %221 = vmatprep.subr.bf16.mxu0 %v190
    %222 = vmatpush1.bf16.msra.mxu0 %v189
    %223 = vmatprep.subr.bf16.mxu0 0
    %224 = vmatpush1.bf16.msra.mxu0 0
    %225 = vmatprep.subr.bf16.mxu0 0
    %226 = vmatpush1.bf16.msra.mxu0 0
    %227 = vmatprep.subr.bf16.mxu0 0
    %228 = vmatpush1.bf16.msra.mxu0 0
    %229 = vmatprep.subr.bf16.mxu0 0
    %230 = vmatpush1.bf16.msra.mxu0 0
    %231 = vmatprep.subr.bf16.mxu0 0
    %232 = vmatpush1.bf16.msra.mxu0 0
    %233 = vmatprep.subr.bf16.mxu0 0
    %234 = vmatpush1.bf16.msra.mxu0 0
    %235 = vmatprep.subr.bf16.mxu0 0
    %236 = vmatpush1.bf16.msra.mxu0 0
    %237 = vmatprep.subr.bf16.mxu0 0
    %238 = vmatpush1.bf16.msra.mxu0 0
    %239 = vmatprep.mubr.bf16.mxu0 0
    %240 = vmatmul.mubr.bf16.gmra.mrb[0].mxu0 %v111
    %v241 = vpop.f32.mrb[0].mxu0
    %v242 = vadd.f32 0.0, %v241
    %v243 = vpop.f32.mrb[0].mxu0
    %v244 = vadd.f32 0.0, %v243
    %v245 = vpop.f32.mrb[0].mxu0
    %v246 = vadd.f32 0.0, %v245
    %v247 = vpop.f32.mrb[0].mxu0
    %v248 = vadd.f32 0.0, %v247
    %249 = vmatprep.mubr.bf16.mxu0 0
    %250 = vmatmul.mubr.bf16.gmra.mrb[0].mxu0 %v112
    %v251 = vpop.f32.mrb[0].mxu0
    %v252 = vadd.f32 0.0, %v251
    %v253 = vpop.f32.mrb[0].mxu0
    %v254 = vadd.f32 0.0, %v253
    %v255 = vpop.f32.mrb[0].mxu0
    %v256 = vadd.f32 0.0, %v255
    %v257 = vpop.f32.mrb[0].mxu0
    %v258 = vadd.f32 0.0, %v257
    %259 = vmatprep.mubr.bf16.mxu0 0
    %260 = vmatmul.mubr.bf16.gmra.mrb[0].mxu0 %v113
    %v261 = vpop.f32.mrb[0].mxu0
    %v262 = vadd.f32 0.0, %v261
    %v263 = vpop.f32.mrb[0].mxu0
    %v264 = vadd.f32 0.0, %v263
    %v265 = vpop.f32.mrb[0].mxu0
    %v266 = vadd.f32 0.0, %v265
    %v267 = vpop.f32.mrb[0].mxu0
    %v268 = vadd.f32 0.0, %v267
    %269 = vmatprep.mubr.bf16.mxu0 0
    %270 = vmatmul.mubr.bf16.gmra.mrb[0].mxu0 %v114
    %v271 = vpop.f32.mrb[0].mxu0
    %v272 = vadd.f32 0.0, %v271
    %v273 = vpop.f32.mrb[0].mxu0
    %v274 = vadd.f32 0.0, %v273
    %v275 = vpop.f32.mrb[0].mxu0
    %v276 = vadd.f32 0.0, %v275
    %v277 = vpop.f32.mrb[0].mxu0
    %v278 = vadd.f32 0.0, %v277
    %279 = vmatprep.mubr.bf16.mxu0 0
    %280 = vmatmul.mubr.bf16.gmra.mrb[0].mxu0 %v115
    %v281 = vpop.f32.mrb[0].mxu0
    %v282 = vadd.f32 0.0, %v281
    %v283 = vpop.f32.mrb[0].mxu0
    %v284 = vadd.f32 0.0, %v283
    %v285 = vpop.f32.mrb[0].mxu0
    %v286 = vadd.f32 0.0, %v285
    %v287 = vpop.f32.mrb[0].mxu0
    %v288 = vadd.f32 0.0, %v287
    %289 = vmatprep.mubr.bf16.mxu0 0
    %290 = vmatmul.mubr.bf16.gmra.mrb[0].mxu0 %v116
    %v291 = vpop.f32.mrb[0].mxu0
    %v292 = vadd.f32 0.0, %v291
    %v293 = vpop.f32.mrb[0].mxu0
    %v294 = vadd.f32 0.0, %v293
    %v295 = vpop.f32.mrb[0].mxu0
    %v296 = vadd.f32 0.0, %v295
    %v297 = vpop.f32.mrb[0].mxu0
    %v298 = vadd.f32 0.0, %v297
    %299 = vmatprep.mubr.bf16.mxu0 0
    %300 = vmatmul.mubr.bf16.gmra.mrb[0].mxu0 %v117
    %v301 = vpop.f32.mrb[0].mxu0
    %v302 = vadd.f32 0.0, %v301
    %v303 = vpop.f32.mrb[0].mxu0
    %v304 = vadd.f32 0.0, %v303
    %v305 = vpop.f32.mrb[0].mxu0
    %v306 = vadd.f32 0.0, %v305
    %v307 = vpop.f32.mrb[0].mxu0
    %v308 = vadd.f32 0.0, %v307
    %309 = vmatprep.mubr.bf16.mxu0 0
    %310 = vmatmul.mubr.bf16.gmra.mrb[0].mxu0 %v118
    %v311 = vpop.f32.mrb[0].mxu0
    %v312 = vadd.f32 0.0, %v311
    %v313 = vpop.f32.mrb[0].mxu0
    %v314 = vadd.f32 0.0, %v313
    %v315 = vpop.f32.mrb[0].mxu0
    %v316 = vadd.f32 0.0, %v315
    %v317 = vpop.f32.mrb[0].mxu0
    %v318 = vadd.f32 0.0, %v317
    %319 = vdwg.mxu0
    %v320 = vpack.c.bf16 %v246, %v242
    %v321 = vpack.c.bf16 %v256, %v252
    %v322 = vpack.c.bf16 %v266, %v262
    %v323 = vpack.c.bf16 %v276, %v272
    %v324 = vpack.c.bf16 %v286, %v282
    %v325 = vpack.c.bf16 %v296, %v292
    %v326 = vpack.c.bf16 %v306, %v302
    %v327 = vpack.c.bf16 %v316, %v312
    %v336 = vunpack.c.l.b16 %v320
    %v337 = vunpack.c.h.b16 %v320
    %v338 = vunpack.c.l.b16 %v321
    %v339 = vunpack.c.h.b16 %v321
    %v340 = vunpack.c.l.b16 %v322
    %v341 = vunpack.c.h.b16 %v322
    %v342 = vunpack.c.l.b16 %v323
    %v343 = vunpack.c.h.b16 %v323
    %v344 = vunpack.c.l.b16 %v324
    %v345 = vunpack.c.h.b16 %v324
    %v346 = vunpack.c.l.b16 %v325
    %v347 = vunpack.c.h.b16 %v325
    %v348 = vunpack.c.l.b16 %v326
    %v349 = vunpack.c.h.b16 %v326
    %v350 = vunpack.c.l.b16 %v327
    %v351 = vunpack.c.h.b16 %v327
    %v352 = vpack.c.b16 %v336, %v336
    %v353 = vpack.c.b16 %v337, %v337
    %v354 = vpack.c.b16 %v338, %v338
    %v355 = vpack.c.b16 %v339, %v339
    %v356 = vpack.c.b16 %v340, %v340
    %v357 = vpack.c.b16 %v341, %v341
    %v358 = vpack.c.b16 %v342, %v342
    %v359 = vpack.c.b16 %v343, %v343
    %v360 = vpack.c.b16 %v344, %v344
    %v361 = vpack.c.b16 %v345, %v345
    %v362 = vpack.c.b16 %v346, %v346
    %v363 = vpack.c.b16 %v347, %v347
    %v364 = vpack.c.b16 %v348, %v348
    %v365 = vpack.c.b16 %v349, %v349
    %v366 = vpack.c.b16 %v350, %v350
    %v367 = vpack.c.b16 %v351, %v351
    %384 = vst [vmem:[#allocation7] sm:$0xf] %v352
    %385 = vst [vmem:[#allocation7 + $0x4] sm:$0xf] %v353
    %386 = vst [vmem:[#allocation7 + $0x8] sm:$0xf] %v354
    %387 = vst [vmem:[#allocation7 + $0xc] sm:$0xf] %v355
    %388 = vst [vmem:[#allocation7 + $0x10] sm:$0xf] %v356
    %389 = vst [vmem:[#allocation7 + $0x14] sm:$0xf] %v357
    %390 = vst [vmem:[#allocation7 + $0x18] sm:$0xf] %v358
    %391 = vst [vmem:[#allocation7 + $0x1c] sm:$0xf] %v359
    %392 = vst [vmem:[#allocation7 + $0x20] sm:$0xf] %v360
    %393 = vst [vmem:[#allocation7 + $0x24] sm:$0xf] %v361
    %394 = vst [vmem:[#allocation7 + $0x28] sm:$0xf] %v362
    %395 = vst [vmem:[#allocation7 + $0x2c] sm:$0xf] %v363
    %396 = vst [vmem:[#allocation7 + $0x30] sm:$0xf] %v364
    %397 = vst [vmem:[#allocation7 + $0x34] sm:$0xf] %v365
    %398 = vst [vmem:[#allocation7 + $0x38] sm:$0xf] %v366
    %399 = vst [vmem:[#allocation7 + $0x3c] sm:$0xf] %v367
    %v400 = vld [vmem:[%s2] sm:$0x1]
    %v402 = vlaneseq
    %v403 = vshrl.u32 %v402, 7
    %v404 = vsub.s32 0, %v403
    %v405 = vrot.slane %v400, %v404
    %v407 = vadd.f32 %v244, %v405
    %v408 = vadd.f32 %v248, %v405
    %v409 = vadd.f32 %v254, %v405
    %v410 = vadd.f32 %v258, %v405
    %v411 = vadd.f32 %v264, %v405
    %v412 = vadd.f32 %v268, %v405
    %v413 = vadd.f32 %v274, %v405
    %v414 = vadd.f32 %v278, %v405
    %v415 = vadd.f32 %v284, %v405
    %v416 = vadd.f32 %v288, %v405
    %v417 = vadd.f32 %v294, %v405
    %v418 = vadd.f32 %v298, %v405
    %v419 = vadd.f32 %v304, %v405
    %v420 = vadd.f32 %v308, %v405
    %v421 = vadd.f32 %v314, %v405
    %v422 = vadd.f32 %v318, %v405
    %v423 = vpack.c.bf16 %v408, %v407
    %v424 = vpack.c.bf16 %v410, %v409
    %v425 = vpack.c.bf16 %v412, %v411
    %v426 = vpack.c.bf16 %v414, %v413
    %v427 = vpack.c.bf16 %v416, %v415
    %v428 = vpack.c.bf16 %v418, %v417
    %v429 = vpack.c.bf16 %v420, %v419
    %v430 = vpack.c.bf16 %v422, %v421
    %v439 = vunpack.c.l.b16 %v423
    %v440 = vunpack.c.h.b16 %v423
    %v441 = vunpack.c.l.b16 %v424
    %v442 = vunpack.c.h.b16 %v424
    %v443 = vunpack.c.l.b16 %v425
    %v444 = vunpack.c.h.b16 %v425
    %v445 = vunpack.c.l.b16 %v426
    %v446 = vunpack.c.h.b16 %v426
    %v447 = vunpack.c.l.b16 %v427
    %v448 = vunpack.c.h.b16 %v427
    %v449 = vunpack.c.l.b16 %v428
    %v450 = vunpack.c.h.b16 %v428
    %v451 = vunpack.c.l.b16 %v429
    %v452 = vunpack.c.h.b16 %v429
    %v453 = vunpack.c.l.b16 %v430
    %v454 = vunpack.c.h.b16 %v430
    %v455 = vpack.c.b16 %v439, %v439
    %v456 = vpack.c.b16 %v440, %v440
    %v457 = vpack.c.b16 %v441, %v441
    %v458 = vpack.c.b16 %v442, %v442
    %v459 = vpack.c.b16 %v443, %v443
    %v460 = vpack.c.b16 %v444, %v444
    %v461 = vpack.c.b16 %v445, %v445
    %v462 = vpack.c.b16 %v446, %v446
    %v463 = vpack.c.b16 %v447, %v447
    %v464 = vpack.c.b16 %v448, %v448
    %v465 = vpack.c.b16 %v449, %v449
    %v466 = vpack.c.b16 %v450, %v450
    %v467 = vpack.c.b16 %v451, %v451
    %v468 = vpack.c.b16 %v452, %v452
    %v469 = vpack.c.b16 %v453, %v453
    %v470 = vpack.c.b16 %v454, %v454
    %487 = vst [vmem:[#allocation8] sm:$0xf] %v455
    %488 = vst [vmem:[#allocation8 + $0x4] sm:$0xf] %v456
    %489 = vst [vmem:[#allocation8 + $0x8] sm:$0xf] %v457
    %490 = vst [vmem:[#allocation8 + $0xc] sm:$0xf] %v458
    %491 = vst [vmem:[#allocation8 + $0x10] sm:$0xf] %v459
    %492 = vst [vmem:[#allocation8 + $0x14] sm:$0xf] %v460
    %493 = vst [vmem:[#allocation8 + $0x18] sm:$0xf] %v461
    %494 = vst [vmem:[#allocation8 + $0x1c] sm:$0xf] %v462
    %495 = vst [vmem:[#allocation8 + $0x20] sm:$0xf] %v463
    %496 = vst [vmem:[#allocation8 + $0x24] sm:$0xf] %v464
    %497 = vst [vmem:[#allocation8 + $0x28] sm:$0xf] %v465
    %498 = vst [vmem:[#allocation8 + $0x2c] sm:$0xf] %v466
    %499 = vst [vmem:[#allocation8 + $0x30] sm:$0xf] %v467
    %500 = vst [vmem:[#allocation8 + $0x34] sm:$0xf] %v468
    %501 = vst [vmem:[#allocation8 + $0x38] sm:$0xf] %v469
    %502 = vst [vmem:[#allocation8 + $0x3c] sm:$0xf] %v470
    // Predicated region
    $region22: #{tpu_custom_call.1} parent=1 // pred_check
      _
    $region23: #{tpu_custom_call.1} parent=1 // pred_check_branch
      %504 = sbr.rel (0) target = $region25
    $region24: #{tpu_custom_call.1} parent=1 // pred_region
      %s506 = ssub.s32 1024, 1024
      %507 = vsyncadd [#allocation4], %s506
      %s508 = sshll.u32 [#allocation7], 4
      %s509 = int_to_ptr.vmem [resolvable:$true] %s508
      %514 = dma.vmem_to_hbm [thread:$0]  %s509, 1024, %s3, [#allocation4], 64, 64, 4
    $region25: #{tpu_custom_call.1} parent=1 // pred_fallthru
      _
    // Predicated region
    $region26: #{tpu_custom_call.1} parent=1 // pred_check
      _
    $region27: #{tpu_custom_call.1} parent=1 // pred_check_branch
      %516 = sbr.rel (0) target = $region29
    $region28: #{tpu_custom_call.1} parent=1 // pred_region
      %s518 = ssub.s32 1024, 1024
      %519 = vsyncadd [#allocation9], %s518
      %s520 = sshll.u32 [#allocation8], 4
      %s521 = int_to_ptr.vmem [resolvable:$true] %s520
      %526 = dma.vmem_to_hbm [thread:$0]  %s521, 1024, %s4, [#allocation9], 64, 64, 4
    $region29: #{tpu_custom_call.1} parent=1 // pred_fallthru
      _
    // Predicated region
    $region30: #{tpu_custom_call.1} parent=1 // pred_check
      _
    $region31: #{tpu_custom_call.1} parent=1 // pred_check_branch
      %528 = sbr.rel (0) target = $region33
    $region32: #{tpu_custom_call.1} parent=1 // pred_region
      %529 = dma.done [#allocation4], 1024
    $region33: #{tpu_custom_call.1} parent=1 // pred_fallthru
      _
    // Predicated region
    $region34: #{tpu_custom_call.1} parent=1 // pred_check
      _
    $region35: #{tpu_custom_call.1} parent=1 // pred_check_branch
      %531 = sbr.rel (0) target = $region37
    $region36: #{tpu_custom_call.1} parent=1 // pred_region
      %532 = dma.done [#allocation9], 1024
    $region37: #{tpu_custom_call.1} parent=1 // pred_fallthru
      _
    %533 = vsyncpa [#allocation3], 1
    %534 = vsyncpa [#allocation6], 1
    %535 = vsyncpa [#allocation4], 1
    %536 = vsyncpa [#allocation9], 1

</llo_original>
